<compile_context>
chip_gen: v5e
topology: v5e:2x2
jax: 0.10.0
libtpu: 0.0.40
codegen_flags: <defaults>
</compile_context>

<pallas_src>
import jax
import jax.numpy as jnp
from jax.experimental import pallas as pl
from jax.experimental.pallas import tpu as pltpu


_TARGET_TILE_BYTES = 4 * 1024 * 1024   # ~1024x1024 f32 block per grid step
_MIN_GRID = 4                          # >= 2 * num TensorCores (v7x megacore)
_SMALL_INPUT_BYTES = 256 * 1024        # below this, plain JAX wins
_MAX_LANE = 2048                       # lane-dense trailing dim (multiple of 128)


def _round_down(x, m):
    return (x // m) * m


def _round_up(x, m):
    return ((x + m - 1) // m) * m


def _pick_lane(total):
    """Largest multiple of 128 (capped at _MAX_LANE) that divides `total`, else 0."""
    start = min(_MAX_LANE, _round_down(total, 128))
    for lane in range(start, 0, -128):
        if total % lane == 0:
            return lane
    return 0


def _pick_tile_rows(rows, lane, itemsize):
    """Row-tile: dtype-packed sublanes, ~_TARGET_TILE_BYTES, and >=_MIN_GRID steps."""
    rows_pack = max(8, 32 // itemsize)          # f32: 8, bf16/f16: 16, int8/fp8: 32
    if rows <= rows_pack:
        return rows                             # single full-height block (legal)
    cap = max(rows_pack,
              _round_down(_TARGET_TILE_BYTES // (lane * itemsize), rows_pack))
    want = _round_up(pl.cdiv(rows, _MIN_GRID), rows_pack)
    return max(rows_pack, min(cap, want, _round_down(rows, rows_pack)))


def _scale_kernel(scale_ref, x_ref, o_ref):
    # scale_ref: (1,) f32 in SMEM; x_ref/o_ref: (tile_rows, lane) in VMEM.
    # Pure HBM-streaming kernel: a single broadcast VPU multiply per vreg.
    o_ref[...] = (x_ref[...] * scale_ref[0]).astype(o_ref.dtype)


def scale_layer(x: jax.Array, scale, *,
                min_pallas_bytes: int = _SMALL_INPUT_BYTES,
                donate_x: bool = False) -> jax.Array:
    """ScaleLayer.forward: x * scale.  x: any shape; scale: scalar/(1,) parameter."""
    scale_f32 = jnp.asarray(scale, dtype=jnp.float32).reshape((1,))

    # PyTorch-style type promotion against the f32 parameter.
    if jnp.issubdtype(x.dtype, jnp.floating):
        out_dtype = jnp.promote_types(x.dtype, jnp.float32)
    else:
        out_dtype = jnp.float32

    total = x.size
    itemsize = x.dtype.itemsize
    if total == 0 or total * itemsize < min_pallas_bytes:
        # Small / empty inputs: kernel launch overhead dominates; let XLA fuse it.
        return x.astype(out_dtype) * scale_f32.astype(out_dtype)[0]

    lane = _pick_lane(total)
    if lane == 0:
        # Flattened size not a multiple of 128: padding would stream the whole
        # array twice, so use the (already roofline-bound) plain multiply.
        # TODO(synk): could instead handle a masked remainder tile in-kernel.
        return x.astype(out_dtype) * scale_f32.astype(out_dtype)[0]

    rows = total // lane
    tile_rows = _pick_tile_rows(rows, lane, itemsize)
    grid = (pl.cdiv(rows, tile_rows),)          # last block may be partial (masked)
    x2d = x.reshape(rows, lane)                 # metadata-only, no copy

    kwargs = {}
    if donate_x and out_dtype == x.dtype:
        # In-place on the slab; only a real win if the caller donates x.
        kwargs["input_output_aliases"] = {1: 0}

    out2d = pl.pallas_call(
        _scale_kernel,
        out_shape=jax.ShapeDtypeStruct((rows, lane), out_dtype),
        grid=grid,
        in_specs=[
            pl.BlockSpec(memory_space=pltpu.MemorySpace.SMEM),       # scale (1,)
            pl.BlockSpec((tile_rows, lane), lambda i: (i, 0)),       # x tile
        ],
        out_specs=pl.BlockSpec((tile_rows, lane), lambda i: (i, 0)),
        compiler_params=pltpu.CompilerParams(
            dimension_semantics=("parallel",),
            vmem_limit_bytes=32 * 1024 * 1024,   # 4 MiB tiles fit even on v5e
        ),
        **kwargs,
    )(scale_f32, x2d)

    return out2d.reshape(x.shape)


if __name__ == "__main__":
    key = jax.random.PRNGKey(0)
    init_value = 0.001
    # nn.Parameter(torch.FloatTensor([0.001]))
    scale = jnp.array([init_value], dtype=jnp.float32)

    # TODO(synk): the PyTorch forward also does `print(self.scale)` (a stdout
    # side effect, not compute); not replicated in the kernel.

    k1, k2, k3 = jax.random.split(key, 3)

    # (A) Spec-sized input: small-input fast path (plain fused multiply).
    xa = jax.random.normal(k1, (2, 4, 16, 16), dtype=jnp.float32)
    oa = scale_layer(xa, scale)
    jax.block_until_ready(oa)
    assert oa.shape == xa.shape and oa.dtype == xa.dtype
    assert jnp.allclose(oa, xa * init_value, atol=1e-6, rtol=1e-6)

    # (B) Same spec shape forced through the Pallas kernel (single block).
    ob = scale_layer(xa, scale, min_pallas_bytes=0)
    jax.block_until_ready(ob)
    assert ob.shape == xa.shape and ob.dtype == xa.dtype
    assert jnp.allclose(ob, xa * init_value, atol=1e-6, rtol=1e-6)

    # (C) ResNet-sized f32 feature map: lane-dense multi-step kernel path
    #     (zero-copy tiling, partial last row-block, grid of 4 steps).
    xc = jax.random.normal(k2, (2, 64, 56, 56), dtype=jnp.float32)
    oc = scale_layer(xc, scale)
    jax.block_until_ready(oc)
    assert oc.shape == xc.shape and oc.dtype == xc.dtype
    assert jnp.allclose(oc, xc * init_value, atol=1e-6, rtol=1e-6)

    # (D) bf16 activations: dtype-aware packing + PyTorch-style promote to f32.
    xd = jax.random.normal(k3, (2, 16, 16, 16), dtype=jnp.bfloat16)
    od = scale_layer(xd, scale, min_pallas_bytes=0)
    jax.block_until_ready(od)
    assert od.shape == xd.shape and od.dtype == jnp.float32
    assert jnp.allclose(od, xd.astype(jnp.float32) * init_value, atol=1e-3, rtol=1e-3)

    print("KERNEL_OK")
</pallas_src>

<mosaic_0001>
module attributes {stable_mosaic.version = 11 : i64} {
  func.func @_scale_kernel(%arg0: i32, %arg1: memref<1xf32, #tpu.memory_space<smem>>, %arg2: memref<1x2048xf32, #tpu.memory_space<vmem>>, %arg3: memref<1x2048xf32, #tpu.memory_space<vmem>>) attributes {dimension_semantics = [#tpu.dimension_semantics<parallel>], iteration_bounds = array<i64: 1>, scalar_prefetch = 0 : i64, scratch_operands = 0 : i64, tpu.core_type = #tpu.core_type<tc>, window_params = [{transform_indices = @transform_0, window_bounds = array<i64: 1>}, {transform_indices = @transform_1, window_bounds = array<i64: 1, 2048>}, {transform_indices = @transform_2, window_bounds = array<i64: 1, 2048>}]} {
    %c0 = arith.constant 0 : index
    %c0_0 = arith.constant 0 : index
    %0 = vector.load %arg2[%c0, %c0_0] : memref<1x2048xf32, #tpu.memory_space<vmem>>, vector<1x2048xf32>
    %c0_1 = arith.constant 0 : index
    %1 = memref.load %arg1[%c0_1] : memref<1xf32, #tpu.memory_space<smem>>
    %2 = vector.broadcast %1 : f32 to vector<1x2048xf32>
    %3 = arith.mulf %0, %2 : vector<1x2048xf32>
    %c0_2 = arith.constant 0 : index
    %c0_3 = arith.constant 0 : index
    %4 = vector.load %arg3[%c0_2, %c0_3] : memref<1x2048xf32, #tpu.memory_space<vmem>>, vector<1x2048xf32>
    tpu.vector_store %arg3[%c0_2, %c0_3], %3 {strides = array<i32>} : memref<1x2048xf32, #tpu.memory_space<vmem>>, vector<1x2048xf32>,
    return
  }
  func.func @transform_0(%arg0: i32) -> i32 {
    %c0_i32 = arith.constant 0 : i32
    %c0_i32_0 = arith.constant 0 : i32
    return %c0_i32 : i32
  }
  func.func @transform_1(%arg0: i32) -> (i32, i32) {
    %c0_i32 = arith.constant 0 : i32
    %c0_i32_0 = arith.constant 0 : i32
    return %arg0, %c0_i32 : i32, i32
  }
  func.func @transform_2(%arg0: i32) -> (i32, i32) {
    %c0_i32 = arith.constant 0 : i32
    %c0_i32_0 = arith.constant 0 : i32
    return %arg0, %c0_i32 : i32, i32
  }
}

</mosaic_0001>

<llo_original>
// kernel: tpu_custom_call.1
$region0: #{tpu_custom_call.1}
  #allocation0 [shape = 'u32[]', space=smem, size = 0x4, offset = 0x4, fixed_abs, tag = 'smem constant byte address 0x4 - core index']
  #allocation1 [shape = 'u32[72,128]{1,0:T(1,128)}', space=vmem, size = 0x9000, scoped, tag = 'internal scratch']
  #allocation2 [shape = 'f32[1]{0:T(128)S(6)}', space=smem, size = 0x200, scoped, tag = 'scoped memory for tpu_custom_call.1']
  %s0 = inlined_call_operand.<no memory space> [shape: f32[1], index: 0, kind: input, shape index: {}]
  %s1 = inlined_call_operand.hbm [shape: f32[1,2048], index: 1, kind: input, shape index: {}]
  %s2 = inlined_call_operand.hbm [shape: f32[1,2048], index: 2, kind: output, shape index: {}]
  %s3 = sld [smem:[#allocation0]]
  $region22: #{tpu_custom_call.1} parent=0
    _
  %s5 = ssub.s32 1, %s3
  %s6 = scalar_select 0, %s5, %s3
  %7 = sst [smem:[#allocation2]] %s0
  $region1: #{tpu_custom_call.1} parent=0
    #allocation3 [shape = 'u8[8192]{0}', space=vmem, size = 0x2000, scoped, tag = 'input window, operand 1, single buffered']
    #allocation4 [shape = 's32[1]{0}', space=sflag, size = 0x4, scoped, tag = 'scoped memory for tpu_custom_call.1']
    #allocation5 [shape = 's32[1]{0}', space=sflag, size = 0x4, scoped, tag = 'scoped memory for tpu_custom_call.1']
    #allocation6 [shape = 'u8[8192]{0}', space=vmem, size = 0x2000, scoped, tag = 'output window, operand 0, single buffered']
    %8 = vsyncpa [#allocation4], 0
    %9 = vsyncpa [#allocation5], 0
    // Predicated region
    $region2: #{tpu_custom_call.1} parent=1 // pred_check
      _
    $region3: #{tpu_custom_call.1} parent=1 // pred_check_branch
      %11 = sbr.rel (0) target = $region5
    $region4: #{tpu_custom_call.1} parent=1 // pred_region
      _
    $region5: #{tpu_custom_call.1} parent=1 // pred_fallthru
      _
    // Predicated region
    $region6: #{tpu_custom_call.1} parent=1 // pred_check
      _
    $region7: #{tpu_custom_call.1} parent=1 // pred_check_branch
      %13 = sbr.rel (0) target = $region9
    $region8: #{tpu_custom_call.1} parent=1 // pred_region
      %15 = vsyncadd [#allocation4], 0
      %s17 = sshll.u32 %s1, 4
      %s18 = int_to_ptr.hbm [resolvable:$true] %s17
      %s19 = sshll.u32 [#allocation3], 4
      %s20 = int_to_ptr.vmem [resolvable:$true] %s19
      %22 = dma.hbm_to_vmem [thread:$0]  %s18, 256, %s20, [#allocation4]
    $region9: #{tpu_custom_call.1} parent=1 // pred_fallthru
      _
    // Predicated region
    $region10: #{tpu_custom_call.1} parent=1 // pred_check
      _
    $region11: #{tpu_custom_call.1} parent=1 // pred_check_branch
      %24 = sbr.rel (0) target = $region13
    $region12: #{tpu_custom_call.1} parent=1 // pred_region
      %26 = dma.done [#allocation4], 256
    $region13: #{tpu_custom_call.1} parent=1 // pred_fallthru
      _
    %v27 = vld [vmem:[#allocation3] sm:$0xff]
    %v28 = vld [vmem:[#allocation3 + $0x8] sm:$0xff]
    %s29 = sld [smem:[#allocation2]]
    %v30 = vstv %s29
    %v31 = vmul.f32 %v27, %v30
    %v32 = vmul.f32 %v28, %v30
    %33 = vst [vmem:[#allocation6] sm:$0xff] %v31
    %34 = vst [vmem:[#allocation6 + $0x8] sm:$0xff] %v32
    // Predicated region
    $region14: #{tpu_custom_call.1} parent=1 // pred_check
      _
    $region15: #{tpu_custom_call.1} parent=1 // pred_check_branch
      %36 = sbr.rel (0) target = $region17
    $region16: #{tpu_custom_call.1} parent=1 // pred_region
      %38 = vsyncadd [#allocation5], 0
      %s40 = sshll.u32 [#allocation6], 4
      %s41 = int_to_ptr.vmem [resolvable:$true] %s40
      %s42 = sshll.u32 %s2, 4
      %s43 = int_to_ptr.hbm [resolvable:$true] %s42
      %45 = dma.vmem_to_hbm [thread:$0]  %s41, 256, %s43, [#allocation5]
    $region17: #{tpu_custom_call.1} parent=1 // pred_fallthru
      _
    // Predicated region
    $region18: #{tpu_custom_call.1} parent=1 // pred_check
      _
    $region19: #{tpu_custom_call.1} parent=1 // pred_check_branch
      %47 = sbr.rel (0) target = $region21
    $region20: #{tpu_custom_call.1} parent=1 // pred_region
      %49 = dma.done [#allocation5], 256
    $region21: #{tpu_custom_call.1} parent=1 // pred_fallthru
      _
    %50 = vsyncpa [#allocation4], 1
    %51 = vsyncpa [#allocation5], 1

</llo_original>
